<compile_context>
chip_gen: v7x
topology: tpu7x:2x2x1
jax: 0.10.0
libtpu: 0.0.40
codegen_flags: <defaults>
</compile_context>

<pallas_src>
import math

import jax
import jax.numpy as jnp
from jax import lax
from jax.experimental import pallas as pl
from jax.experimental.pallas import tpu as pltpu


def _keep_threshold_u32(dropout_p: float) -> int:
    # keep iff bits >= threshold  =>  P(keep) = 1 - threshold / 2^32 = 1 - p
    return min(int(round(dropout_p * (1 << 32))), (1 << 32) - 1)


def _make_attention_kernel(scale: float, dropout_p: float):
    apply_dropout = dropout_p > 0.0
    threshold = _keep_threshold_u32(dropout_p)

    def kernel(q_ref, k_ref, v_ref, bits_ref, o_ref):
        q = q_ref[0]          # (Lq, D)  f32
        k = k_ref[0]          # (Lk, D)  f32
        v = v_ref[0]          # (Lk, Dv) f32

        # Scale q (Lq*D elements) instead of the (Lq*Lk) score matrix.
        qs = q * jnp.float32(scale)

        # q @ k^T without materializing a transpose: contract on last dims.
        s = lax.dot_general(
            qs, k,
            dimension_numbers=(((1,), (1,)), ((), ())),
            preferred_element_type=jnp.float32,
        )  # (Lq, Lk)

        # Numerically stable softmax.
        m = jnp.max(s, axis=-1, keepdims=True)
        e = jnp.exp(s - m)
        denom = jnp.sum(e, axis=-1, keepdims=True)

        if apply_dropout:
            # Fold the 1/(1-p) dropout rescale into the softmax denominator:
            # one reciprocal on a (Lq, 1) vector, one broadcast multiply.
            inv = 1.0 / (denom * jnp.float32(1.0 - dropout_p))
            p = e * inv
            keep = bits_ref[0] >= jnp.uint32(threshold)   # uint32 compare
            p = jnp.where(keep, p, jnp.float32(0.0))
        else:
            p = e * (1.0 / denom)

        out = jnp.dot(p, v, preferred_element_type=jnp.float32)  # (Lq, Dv)
        o_ref[0] = out.astype(o_ref.dtype)

    return kernel


def attention_dropout(query, key, value, dropout_bits=None, dropout_p=0.2):
    """query: (B, Lq, D), key: (B, Lk, D), value: (B, Lk, Dv) -> (B, Lq, Dv).

    dropout_bits: optional uint32 array (B, Lq, Lk) of uniform random bits used
    for the dropout mask (required when dropout_p > 0).
    """
    B, Lq, D = query.shape
    Bk, Lk, Dk = key.shape
    Bv, Lkv, Dv = value.shape
    assert B == Bk == Bv and D == Dk and Lk == Lkv

    attention_head_size = D
    scale = 1.0 / math.sqrt(attention_head_size)
    dropout_p = float(dropout_p)

    if dropout_p > 0.0:
        assert dropout_bits is not None and dropout_bits.shape == (B, Lq, Lk)
        bits = dropout_bits.astype(jnp.uint32)
    else:
        bits = jnp.zeros((B, Lq, Lk), dtype=jnp.uint32)  # unused placeholder

    kernel = _make_attention_kernel(scale, dropout_p)

    return pl.pallas_call(
        kernel,
        out_shape=jax.ShapeDtypeStruct((B, Lq, Dv), jnp.float32),
        grid=(B,),
        in_specs=[
            pl.BlockSpec((1, Lq, D), lambda b: (b, 0, 0)),
            pl.BlockSpec((1, Lk, D), lambda b: (b, 0, 0)),
            pl.BlockSpec((1, Lk, Dv), lambda b: (b, 0, 0)),
            pl.BlockSpec((1, Lq, Lk), lambda b: (b, 0, 0)),
        ],
        out_specs=pl.BlockSpec((1, Lq, Dv), lambda b: (b, 0, 0)),
        compiler_params=pltpu.CompilerParams(
            dimension_semantics=("parallel",)),  # v7x: 2 TCs take one batch each
    )(query, key, value, bits)


def _reference(query, key, value, bits, dropout_p):
    """Pure-JAX reference with identical dropout semantics (same bits/threshold)."""
    D = query.shape[-1]
    s = jnp.einsum("bqd,bkd->bqk", query, key,
                   precision=lax.Precision.HIGHEST) / math.sqrt(D)
    p = jax.nn.softmax(s, axis=-1)
    if dropout_p > 0.0:
        keep = bits >= jnp.uint32(_keep_threshold_u32(dropout_p))
        p = jnp.where(keep, p / (1.0 - dropout_p), 0.0)
    return jnp.einsum("bqk,bkv->bqv", p, value,
                      precision=lax.Precision.HIGHEST)


if __name__ == "__main__":
    root = jax.random.PRNGKey(0)
    kq, kk, kv, kbits = jax.random.split(root, 4)

    B, Lq, Lk, D, Dv = 2, 64, 32, 16, 32
    query = jax.random.normal(kq, (B, Lq, D), dtype=jnp.float32)
    key = jax.random.normal(kk, (B, Lk, D), dtype=jnp.float32)
    value = jax.random.normal(kv, (B, Lk, Dv), dtype=jnp.float32)

    # Sanity path: dropout_p = 0 must match pure-JAX softmax attention.
    out_nodrop = attention_dropout(query, key, value, dropout_p=0.0)
    jax.block_until_ready(out_nodrop)
    ref_nodrop = _reference(query, key, value, None, 0.0)
    assert out_nodrop.shape == (B, Lq, Dv)
    assert jnp.allclose(out_nodrop, ref_nodrop, atol=2e-4, rtol=2e-4), \
        "mismatch vs no-dropout reference"

    # Module semantics: training-mode dropout p = 0.2.  The mask bits are
    # pre-generated, so the kernel can be checked bit-exactly (up to fp order)
    # against a pure-JAX implementation using the same bits.
    bits = jax.random.bits(kbits, (B, Lq, Lk), dtype=jnp.uint32)
    out = attention_dropout(query, key, value, dropout_bits=bits, dropout_p=0.2)
    jax.block_until_ready(out)
    ref = _reference(query, key, value, bits, 0.2)
    assert out.shape == (B, Lq, Dv)
    assert bool(jnp.all(jnp.isfinite(out)))
    assert jnp.allclose(out, ref, atol=2e-4, rtol=2e-4), "mismatch vs dropout reference"

    print("KERNEL_OK")
</pallas_src>

<mosaic_0001>
module attributes {stable_mosaic.version = 11 : i64} {
  func.func @kernel(%arg0: i32, %arg1: memref<1x64x16xf32, #tpu.memory_space<vmem>>, %arg2: memref<1x32x16xf32, #tpu.memory_space<vmem>>, %arg3: memref<1x32x32xf32, #tpu.memory_space<vmem>>, %arg4: memref<1x64x32xi32, #tpu.memory_space<vmem>>, %arg5: memref<1x64x32xf32, #tpu.memory_space<vmem>>) attributes {dimension_semantics = [#tpu.dimension_semantics<parallel>], iteration_bounds = array<i64: 2>, scalar_prefetch = 0 : i64, scratch_operands = 0 : i64, tpu.core_type = #tpu.core_type<tc>, window_params = [{transform_indices = @transform_0, window_bounds = array<i64: 1, 64, 16>}, {transform_indices = @transform_1, window_bounds = array<i64: 1, 32, 16>}, {transform_indices = @transform_2, window_bounds = array<i64: 1, 32, 32>}, {transform_indices = @transform_3, window_bounds = array<i64: 1, 64, 32>}, {transform_indices = @transform_4, window_bounds = array<i64: 1, 64, 32>}]} {
    %c0 = arith.constant 0 : index
    %c0_0 = arith.constant 0 : index
    %c0_1 = arith.constant 0 : index
    %0 = vector.load %arg1[%c0, %c0_0, %c0_1] : memref<1x64x16xf32, #tpu.memory_space<vmem>>, vector<1x64x16xf32>
    %1 = vector.shape_cast %0 : vector<1x64x16xf32> to vector<64x16xf32>
    %c0_2 = arith.constant 0 : index
    %c0_3 = arith.constant 0 : index
    %c0_4 = arith.constant 0 : index
    %2 = vector.load %arg2[%c0_2, %c0_3, %c0_4] : memref<1x32x16xf32, #tpu.memory_space<vmem>>, vector<1x32x16xf32>
    %3 = vector.shape_cast %2 : vector<1x32x16xf32> to vector<32x16xf32>
    %c0_5 = arith.constant 0 : index
    %c0_6 = arith.constant 0 : index
    %c0_7 = arith.constant 0 : index
    %4 = vector.load %arg3[%c0_5, %c0_6, %c0_7] : memref<1x32x32xf32, #tpu.memory_space<vmem>>, vector<1x32x32xf32>
    %5 = vector.shape_cast %4 : vector<1x32x32xf32> to vector<32x32xf32>
    %cst = arith.constant 2.500000e-01 : f32
    %6 = vector.broadcast %cst : f32 to vector<64x16xf32>
    %7 = arith.mulf %1, %6 : vector<64x16xf32>
    %cst_8 = arith.constant dense<0.000000e+00> : vector<64x32xf32>
    %8 = tpu.matmul %7, %3, %cst_8 {dimension_numbers = #tpu.dot_dimension_numbers<[1], [1], [0], [0], [0, 0, 1, 0], [], []>} : vector<64x16xf32>, vector<32x16xf32>, vector<64x32xf32> -> vector<64x32xf32>
    %cst_9 = arith.constant dense<0xFF800000> : vector<64xf32>
    %9 = vector.multi_reduction <maximumf>, %8, %cst_9 [1] : vector<64x32xf32> to vector<64xf32>
    %10 = vector.shape_cast %9 : vector<64xf32> to vector<64x1xf32>
    %11 = vector.broadcast %10 : vector<64x1xf32> to vector<64x32xf32>
    %12 = arith.subf %8, %11 : vector<64x32xf32>
    %13 = math.exp %12 : vector<64x32xf32>
    %cst_10 = arith.constant dense<0.000000e+00> : vector<64xf32>
    %14 = vector.multi_reduction <add>, %13, %cst_10 [1] : vector<64x32xf32> to vector<64xf32>
    %15 = vector.shape_cast %14 : vector<64xf32> to vector<64x1xf32>
    %cst_11 = arith.constant 1.000000e+00 : f32
    %16 = vector.broadcast %cst_11 : f32 to vector<64x1xf32>
    %17 = arith.divf %16, %15 : vector<64x1xf32>
    %18 = vector.broadcast %17 : vector<64x1xf32> to vector<64x32xf32>
    %19 = arith.mulf %13, %18 : vector<64x32xf32>
    %cst_12 = arith.constant dense<0.000000e+00> : vector<64x32xf32>
    %20 = tpu.matmul %19, %5, %cst_12 {dimension_numbers = #tpu.dot_dimension_numbers<[1], [0], [0], [1], [0, 0, 1, 1], [], []>} : vector<64x32xf32>, vector<32x32xf32>, vector<64x32xf32> -> vector<64x32xf32>
    %c0_13 = arith.constant 0 : index
    %c0_14 = arith.constant 0 : index
    %c0_15 = arith.constant 0 : index
    %21 = vector.load %arg5[%c0_13, %c0_14, %c0_15] : memref<1x64x32xf32, #tpu.memory_space<vmem>>, vector<1x64x32xf32>
    %22 = vector.shape_cast %21 : vector<1x64x32xf32> to vector<64x32xf32>
    %23 = vector.shape_cast %20 : vector<64x32xf32> to vector<1x64x32xf32>
    tpu.vector_store %arg5[%c0_13, %c0_14, %c0_15], %23 {strides = array<i32>} : memref<1x64x32xf32, #tpu.memory_space<vmem>>, vector<1x64x32xf32>,
    return
  }
  func.func @transform_0(%arg0: i32) -> (i32, i32, i32) {
    %c0_i32 = arith.constant 0 : i32
    %c0_i32_0 = arith.constant 0 : i32
    %c0_i32_1 = arith.constant 0 : i32
    return %arg0, %c0_i32, %c0_i32_0 : i32, i32, i32
  }
  func.func @transform_1(%arg0: i32) -> (i32, i32, i32) {
    %c0_i32 = arith.constant 0 : i32
    %c0_i32_0 = arith.constant 0 : i32
    %c0_i32_1 = arith.constant 0 : i32
    return %arg0, %c0_i32, %c0_i32_0 : i32, i32, i32
  }
  func.func @transform_2(%arg0: i32) -> (i32, i32, i32) {
    %c0_i32 = arith.constant 0 : i32
    %c0_i32_0 = arith.constant 0 : i32
    %c0_i32_1 = arith.constant 0 : i32
    return %arg0, %c0_i32, %c0_i32_0 : i32, i32, i32
  }
  func.func @transform_3(%arg0: i32) -> (i32, i32, i32) {
    %c0_i32 = arith.constant 0 : i32
    %c0_i32_0 = arith.constant 0 : i32
    %c0_i32_1 = arith.constant 0 : i32
    return %arg0, %c0_i32, %c0_i32_0 : i32, i32, i32
  }
  func.func @transform_4(%arg0: i32) -> (i32, i32, i32) {
    %c0_i32 = arith.constant 0 : i32
    %c0_i32_0 = arith.constant 0 : i32
    %c0_i32_1 = arith.constant 0 : i32
    return %arg0, %c0_i32, %c0_i32_0 : i32, i32, i32
  }
}

</mosaic_0001>

<llo_original>
// kernel: tpu_custom_call.1
$region0: #{tpu_custom_call.1}
  #allocation0 [shape = 'u32[]', space=smem, size = 0x4, offset = 0x4, fixed_abs, tag = 'smem constant byte address 0x4 - core index']
  #allocation1 [shape = 'u32[144,128]{1,0:T(1,128)}', space=vmem, size = 0x12000, scoped, tag = 'internal scratch']
  %s0 = inlined_call_operand.vmem [shape: f32[2,64,16], index: 0, kind: input, shape index: {}]
  %s1 = inlined_call_operand.vmem [shape: f32[2,32,16], index: 1, kind: input, shape index: {}]
  %s2 = inlined_call_operand.vmem [shape: f32[2,32,32], index: 2, kind: input, shape index: {}]
  %s3 = inlined_call_operand.vmem [shape: u32[2,64,32], index: 3, kind: input, shape index: {}]
  %s4 = inlined_call_operand.vmem [shape: f32[2,64,32], index: 4, kind: output, shape index: {}]
  %s5 = sld [smem:[#allocation0]]
  $region49: #{tpu_custom_call.1} parent=0
    _
  %s7 = ssub.s32 1, %s5
  %s8 = scalar_select 0, %s7, %s5
  loop: start=0, step=1, limit=4
  $region2: #{tpu_custom_call.1} parent=0 // loop_pre_header
    _
  $region3: #{tpu_custom_call.1} parent=0 // loop_header
    %s10 = sphi 0, %s14
    %p11 = scmp.ge.s32.totalorder %s10, 4
    %s20 = sphi 0, %s22
    %s23 = sphi 0, %s20
    %s24 = sphi 0, %s23
    %s40 = sphi 0, %s24
    %s46 = sphi 0, %s48
    %s49 = sphi 0, %s46
    %s50 = sphi 0, %s49
    %s66 = sphi 0, %s50
    %s72 = sphi 0, %s74
    %s75 = sphi 0, %s72
    %s76 = sphi 0, %s75
    %s92 = sphi 0, %s76
    %s98 = sphi 0, %s100
    %s101 = sphi 0, %s98
    %s102 = sphi 0, %s101
    %s118 = sphi 0, %s102
    %s124 = sphi 0, %s126
    %s127 = sphi 0, %s124
    %s128 = sphi 0, %s127
    %s144 = sphi 0, %s128
  $region4: #{tpu_custom_call.1} parent=0 // loop_header_branch
    %13 = sbr.rel (%p11) target = $region8
  $region5: #{tpu_custom_call.1} parent=0 // loop_body
    %s15 = ssub.s32 %s10, 1
    %s16 = ssub.s32 %s10, 2
    %s17 = sadd.s32 %s10, 1
    %s18 = ssub.s32 %s10, %s17
    %p19 = scmp.eq.s32.totalorder %s18, 0
    %s21 = sadd.s32 %s20, 1
    %s22 = scalar_select %p19, %s20, %s21
    %p25 = pneg %p19
    %p26 = scmp.eq.s32.totalorder %s10, 1
    %p27 = por %p25, %p26
    %p28 = scmp.ne.s32.totalorder %s20, %s23
    %p29 = scmp.eq.s32.totalorder %s10, 0
    %p30 = por %p28, %p29
    %p31 = scmp.ne.s32.totalorder %s20, %s23
    %p32 = scmp.eq.s32.totalorder %s15, 1
    %p33 = por %p31, %p32
    %p34 = scmp.ne.s32.totalorder %s23, %s24
    %p35 = scmp.eq.s32.totalorder %s15, 0
    %p36 = por %p34, %p35
    %p37 = scmp.ne.s32.totalorder %s23, %s24
    %p38 = scmp.eq.s32.totalorder %s16, 1
    %p39 = por %p37, %p38
    %p41 = scmp.ne.s32.totalorder %s24, %s40
    %p42 = scmp.eq.s32.totalorder %s16, 0
    %p43 = por %p41, %p42
    %s44 = ssub.s32 %s10, %s17
    %p45 = scmp.eq.s32.totalorder %s44, 0
    %s47 = sadd.s32 %s46, 1
    %s48 = scalar_select %p45, %s46, %s47
    %p51 = pneg %p45
    %p52 = scmp.eq.s32.totalorder %s10, 1
    %p53 = por %p51, %p52
    %p54 = scmp.ne.s32.totalorder %s46, %s49
    %p55 = scmp.eq.s32.totalorder %s10, 0
    %p56 = por %p54, %p55
    %p57 = scmp.ne.s32.totalorder %s46, %s49
    %p58 = scmp.eq.s32.totalorder %s15, 1
    %p59 = por %p57, %p58
    %p60 = scmp.ne.s32.totalorder %s49, %s50
    %p61 = scmp.eq.s32.totalorder %s15, 0
    %p62 = por %p60, %p61
    %p63 = scmp.ne.s32.totalorder %s49, %s50
    %p64 = scmp.eq.s32.totalorder %s16, 1
    %p65 = por %p63, %p64
    %p67 = scmp.ne.s32.totalorder %s50, %s66
    %p68 = scmp.eq.s32.totalorder %s16, 0
    %p69 = por %p67, %p68
    %s70 = ssub.s32 %s10, %s17
    %p71 = scmp.eq.s32.totalorder %s70, 0
    %s73 = sadd.s32 %s72, 1
    %s74 = scalar_select %p71, %s72, %s73
    %p77 = pneg %p71
    %p78 = scmp.eq.s32.totalorder %s10, 1
    %p79 = por %p77, %p78
    %p80 = scmp.ne.s32.totalorder %s72, %s75
    %p81 = scmp.eq.s32.totalorder %s10, 0
    %p82 = por %p80, %p81
    %p83 = scmp.ne.s32.totalorder %s72, %s75
    %p84 = scmp.eq.s32.totalorder %s15, 1
    %p85 = por %p83, %p84
    %p86 = scmp.ne.s32.totalorder %s75, %s76
    %p87 = scmp.eq.s32.totalorder %s15, 0
    %p88 = por %p86, %p87
    %p89 = scmp.ne.s32.totalorder %s75, %s76
    %p90 = scmp.eq.s32.totalorder %s16, 1
    %p91 = por %p89, %p90
    %p93 = scmp.ne.s32.totalorder %s76, %s92
    %p94 = scmp.eq.s32.totalorder %s16, 0
    %p95 = por %p93, %p94
    %s96 = ssub.s32 %s10, %s17
    %p97 = scmp.eq.s32.totalorder %s96, 0
    %s99 = sadd.s32 %s98, 1
    %s100 = scalar_select %p97, %s98, %s99
    %p103 = pneg %p97
    %p104 = scmp.eq.s32.totalorder %s10, 1
    %p105 = por %p103, %p104
    %p106 = scmp.ne.s32.totalorder %s98, %s101
    %p107 = scmp.eq.s32.totalorder %s10, 0
    %p108 = por %p106, %p107
    %p109 = scmp.ne.s32.totalorder %s98, %s101
    %p110 = scmp.eq.s32.totalorder %s15, 1
    %p111 = por %p109, %p110
    %p112 = scmp.ne.s32.totalorder %s101, %s102
    %p113 = scmp.eq.s32.totalorder %s15, 0
    %p114 = por %p112, %p113
    %p115 = scmp.ne.s32.totalorder %s101, %s102
    %p116 = scmp.eq.s32.totalorder %s16, 1
    %p117 = por %p115, %p116
    %p119 = scmp.ne.s32.totalorder %s102, %s118
    %p120 = scmp.eq.s32.totalorder %s16, 0
    %p121 = por %p119, %p120
    %s122 = ssub.s32 %s10, %s17
    %p123 = scmp.eq.s32.totalorder %s122, 0
    %s125 = sadd.s32 %s124, 1
    %s126 = scalar_select %p123, %s124, %s125
    %p129 = pneg %p123
    %p130 = scmp.eq.s32.totalorder %s10, 1
    %p131 = por %p129, %p130
    %p132 = scmp.ne.s32.totalorder %s124, %s127
    %p133 = scmp.eq.s32.totalorder %s10, 0
    %p134 = por %p132, %p133
    %p135 = scmp.ne.s32.totalorder %s124, %s127
    %p136 = scmp.eq.s32.totalorder %s15, 1
    %p137 = por %p135, %p136
    %p138 = scmp.ne.s32.totalorder %s127, %s128
    %p139 = scmp.eq.s32.totalorder %s15, 0
    %p140 = por %p138, %p139
    %p141 = scmp.ne.s32.totalorder %s127, %s128
    %p142 = scmp.eq.s32.totalorder %s16, 1
    %p143 = por %p141, %p142
    %p145 = scmp.ne.s32.totalorder %s128, %s144
    %p146 = scmp.eq.s32.totalorder %s16, 0
    %p147 = por %p145, %p146
    %p148 = scmp.le.s32.totalorder 1, %s10
    %p149 = scmp.lt.s32.totalorder %s10, 3
    %p150 = pnand %p148, %p149
    %p151 = pneg %p150
    // Predicated region
    $region9: #{tpu_custom_call.1} parent=5 // pred_check
      _
    $region10: #{tpu_custom_call.1} parent=5 // pred_check_branch
      %153 = sbr.rel (%p150) target = $region12
    $region11: #{tpu_custom_call.1} parent=5 // pred_region
      %s154 = ssub.s32 %s10, 1
    $region12: #{tpu_custom_call.1} parent=5 // pred_fallthru
      _
    %p155 = scmp.lt.s32.totalorder %s10, 2
    // Predicated region
    $region13: #{tpu_custom_call.1} parent=5 // pred_check
      %p156 = pneg %p155
    $region14: #{tpu_custom_call.1} parent=5 // pred_check_branch
      %158 = sbr.rel (%p156) target = $region16
    $region15: #{tpu_custom_call.1} parent=5 // pred_region
      // Predicated region
      $region17: #{tpu_custom_call.1} parent=15 // pred_check
        %p159 = pneg %p30
      $region18: #{tpu_custom_call.1} parent=15 // pred_check_branch
        %161 = sbr.rel (%p159) target = $region20
      $region19: #{tpu_custom_call.1} parent=15 // pred_region
        %p162 = scmp.lt.s32.totalorder %s10, 1
        %s163 = scalar_select %p162, %s10, 1
        %s164 = smul.addr %s163, 8
        %s165 = smul.addr %s164, 8
        %s166 = scalar_lea.vmem %s0, %s165
      $region20: #{tpu_custom_call.1} parent=15 // pred_fallthru
        _
      // Predicated region
      $region21: #{tpu_custom_call.1} parent=15 // pred_check
        %p167 = pneg %p56
      $region22: #{tpu_custom_call.1} parent=15 // pred_check_branch
        %169 = sbr.rel (%p167) target = $region24
      $region23: #{tpu_custom_call.1} parent=15 // pred_region
        %p170 = scmp.lt.s32.totalorder %s10, 1
        %s171 = scalar_select %p170, %s10, 1
        %s172 = smul.addr %s171, 4
        %s173 = smul.addr %s172, 8
        %s174 = scalar_lea.vmem %s1, %s173
      $region24: #{tpu_custom_call.1} parent=15 // pred_fallthru
        _
      // Predicated region
      $region25: #{tpu_custom_call.1} parent=15 // pred_check
        %p175 = pneg %p82
      $region26: #{tpu_custom_call.1} parent=15 // pred_check_branch
        %177 = sbr.rel (%p175) target = $region28
      $region27: #{tpu_custom_call.1} parent=15 // pred_region
        %p178 = scmp.lt.s32.totalorder %s10, 1
        %s179 = scalar_select %p178, %s10, 1
        %s180 = smul.addr %s179, 4
        %s181 = smul.addr %s180, 8
        %s182 = scalar_lea.vmem %s2, %s181
      $region28: #{tpu_custom_call.1} parent=15 // pred_fallthru
        _
      // Predicated region
      $region29: #{tpu_custom_call.1} parent=15 // pred_check
        %p183 = pneg %p108
      $region30: #{tpu_custom_call.1} parent=15 // pred_check_branch
        %185 = sbr.rel (%p183) target = $region32
      $region31: #{tpu_custom_call.1} parent=15 // pred_region
        %p186 = scmp.lt.s32.totalorder %s10, 1
        %s187 = scalar_select %p186, %s10, 1
        %s188 = smul.addr %s187, 8
        %s189 = smul.addr %s188, 8
        %s190 = scalar_lea.vmem %s3, %s189
      $region32: #{tpu_custom_call.1} parent=15 // pred_fallthru
        _
    $region16: #{tpu_custom_call.1} parent=5 // pred_fallthru
      _
    %p191 = scmp.le.s32.totalorder 1, %s10
    %p192 = scmp.lt.s32.totalorder %s10, 3
    %p193 = pnand %p191, %p192
    %p194 = pneg %p193
    // Predicated region
    $region33: #{tpu_custom_call.1} parent=5 // pred_check
      _
    $region34: #{tpu_custom_call.1} parent=5 // pred_check_branch
      %196 = sbr.rel (%p193) target = $region36
    $region35: #{tpu_custom_call.1} parent=5 // pred_region
      %s197 = ssub.s32 %s10, 1
      %p198 = scmp.lt.s32.totalorder %s15, 1
      %s199 = scalar_select %p198, %s15, 1
      %s200 = smul.addr %s199, 8
      %s201 = smul.addr %s200, 8
      %s202 = scalar_lea.vmem %s0, %s201
      %p203 = pneg %p36
      %p204 = pneg %p33
      %p205 = scmp.lt.s32.totalorder %s15, 1
      %s206 = scalar_select %p205, %s15, 1
      %s207 = smul.addr %s206, 4
      %s208 = smul.addr %s207, 8
      %s209 = scalar_lea.vmem %s1, %s208
      %p210 = pneg %p62
      %p211 = pneg %p59
      %p212 = scmp.lt.s32.totalorder %s15, 1
      %s213 = scalar_select %p212, %s15, 1
      %s214 = smul.addr %s213, 4
      %s215 = smul.addr %s214, 8
      %s216 = scalar_lea.vmem %s2, %s215
      %p217 = pneg %p88
      %p218 = pneg %p85
      %p219 = scmp.lt.s32.totalorder %s15, 1
      %s220 = scalar_select %p219, %s15, 1
      %s221 = smul.addr %s220, 8
      %s222 = smul.addr %s221, 8
      %s223 = scalar_lea.vmem %s3, %s222
      %p224 = pneg %p114
      %p225 = pneg %p111
      %p226 = pneg %p140
      %p227 = pneg %p137
      %p228 = scmp.lt.s32.totalorder %s15, 1
      %s229 = scalar_select %p228, %s15, 1
      %s230 = smul.addr %s229, 8
      %s231 = smul.addr %s230, 8
      %s232 = scalar_lea.vmem %s4, %s231
      %p233 = scmp.lt.s32.totalorder %s15, 1
      %s234 = scalar_select %p233, %s15, 1
      %s235 = smul.addr %s234, 8
      %s236 = smul.addr %s235, 8
      %s237 = scalar_lea.vmem %s0, %s236
      %p238 = scmp.lt.s32.totalorder %s15, 1
      %s239 = scalar_select %p238, %s15, 1
      %s240 = smul.addr %s239, 4
      %s241 = smul.addr %s240, 8
      %s242 = scalar_lea.vmem %s1, %s241
      %p243 = scmp.lt.s32.totalorder %s15, 1
      %s244 = scalar_select %p243, %s15, 1
      %s245 = smul.addr %s244, 4
      %s246 = smul.addr %s245, 8
      %s247 = scalar_lea.vmem %s2, %s246
      %p248 = scmp.lt.s32.totalorder %s15, 1
      %s249 = scalar_select %p248, %s15, 1
      %s250 = smul.addr %s249, 8
      %s251 = smul.addr %s250, 8
      %s252 = scalar_lea.vmem %s3, %s251
      %p253 = scmp.lt.s32.totalorder %s15, 1
      %s254 = scalar_select %p253, %s15, 1
      %s255 = smul.addr %s254, 8
      %s256 = smul.addr %s255, 8
      %s257 = scalar_lea.vmem %s4, %s256
      %v258 = vld [vmem:[%s237] sm:$0xff]
      %v259 = vld [vmem:[%s237 + $0x8] sm:$0xff]
      %v260 = vld [vmem:[%s237 + $0x10] sm:$0xff]
      %v261 = vld [vmem:[%s237 + $0x18] sm:$0xff]
      %v262 = vld [vmem:[%s237 + $0x20] sm:$0xff]
      %v263 = vld [vmem:[%s237 + $0x28] sm:$0xff]
      %v264 = vld [vmem:[%s237 + $0x30] sm:$0xff]
      %v265 = vld [vmem:[%s237 + $0x38] sm:$0xff]
      %v266 = vld [vmem:[%s242] sm:$0xff]
      %v267 = vld [vmem:[%s242 + $0x8] sm:$0xff]
      %v268 = vld [vmem:[%s242 + $0x10] sm:$0xff]
      %v269 = vld [vmem:[%s242 + $0x18] sm:$0xff]
      %v270 = vld [vmem:[%s247] sm:$0xff]
      %v271 = vld [vmem:[%s247 + $0x8] sm:$0xff]
      %v272 = vld [vmem:[%s247 + $0x10] sm:$0xff]
      %v273 = vld [vmem:[%s247 + $0x18] sm:$0xff]
      %v274 = vmul.f32 %v258, 0.25
      %v275 = vmul.f32 %v259, 0.25
      %v276 = vmul.f32 %v260, 0.25
      %v277 = vmul.f32 %v261, 0.25
      %v278 = vmul.f32 %v262, 0.25
      %v279 = vmul.f32 %v263, 0.25
      %v280 = vmul.f32 %v264, 0.25
      %v281 = vmul.f32 %v265, 0.25
      %vm282 = vcmask 130048
      %v284 = vsel %vm282, %v274, 0
      %v287 = vsel %vm282, %v275, 0
      %v290 = vsel %vm282, %v276, 0
      %v293 = vsel %vm282, %v277, 0
      %v296 = vsel %vm282, %v278, 0
      %v299 = vsel %vm282, %v279, 0
      %v302 = vsel %vm282, %v280, 0
      %v305 = vsel %vm282, %v281, 0
      %v308 = vsel %vm282, %v266, 0
      %v311 = vsel %vm282, %v267, 0
      %v314 = vsel %vm282, %v268, 0
      %v317 = vsel %vm282, %v269, 0
      %319 = vmatprep.subr.mxu0 0.0
      %320 = vmatpush1.xpose.msra.mxu0 %v308
      %321 = vmatprep.subr.mxu0 0.0
      %322 = vmatpush1.xpose.msra.mxu0 %v311
      %323 = vmatprep.subr.mxu0 0.0
      %324 = vmatpush1.xpose.msra.mxu0 %v314
      %325 = vmatprep.subr.mxu0 0.0
      %326 = vmatpush1.xpose.msra.mxu0 %v317
      %327 = vmatprep.subr.mxu0 0.0
      %328 = vmatpush1.xpose.msra.mxu0 0.0
      %329 = vmatprep.subr.mxu0 0.0
      %330 = vmatpush1.xpose.msra.mxu0 0.0
      %331 = vmatprep.subr.mxu0 0.0
      %332 = vmatpush1.xpose.msra.mxu0 0.0
      %333 = vmatprep.subr.mxu0 0.0
      %334 = vmatpush1.xpose.msra.mxu0 0.0
      %335 = vmatprep.subr.mxu0 0.0
      %336 = vmatpush1.xpose.msra.mxu0 0.0
      %337 = vmatprep.subr.mxu0 0.0
      %338 = vmatpush1.xpose.msra.mxu0 0.0
      %339 = vmatprep.subr.mxu0 0.0
      %340 = vmatpush1.xpose.msra.mxu0 0.0
      %341 = vmatprep.subr.mxu0 0.0
      %342 = vmatpush1.xpose.msra.mxu0 0.0
      %343 = vmatprep.subr.mxu0 0.0
      %344 = vmatpush1.xpose.msra.mxu0 0.0
      %345 = vmatprep.subr.mxu0 0.0
      %346 = vmatpush1.xpose.msra.mxu0 0.0
      %347 = vmatprep.subr.mxu0 0.0
      %348 = vmatpush1.xpose.msra.mxu0 0.0
      %349 = vmatprep.subr.mxu0 0.0
      %350 = vmatpush1.xpose.msra.mxu0 0.0
      %351 = vmatprep.subr.mxu0 0.0
      %352 = vmatpush1.xpose.msra.mxu0 0.0
      %353 = vmatprep.subr.mxu0 0.0
      %354 = vmatpush1.xpose.msra.mxu0 0.0
      %355 = vmatprep.subr.mxu0 0.0
      %356 = vmatpush1.xpose.msra.mxu0 0.0
      %357 = vmatprep.subr.mxu0 0.0
      %358 = vmatpush1.xpose.msra.mxu0 0.0
      %359 = vmatprep.subr.mxu0 0.0
      %360 = vmatpush1.xpose.msra.mxu0 0.0
      %361 = vmatprep.subr.mxu0 0.0
      %362 = vmatpush1.xpose.msra.mxu0 0.0
      %363 = vmatprep.subr.mxu0 0.0
      %364 = vmatpush1.xpose.msra.mxu0 0.0
      %365 = vmatprep.subr.mxu0 0.0
      %366 = vmatpush1.xpose.msra.mxu0 0.0
      %367 = vmatprep.subr.mxu0 0.0
      %368 = vmatpush1.xpose.msra.mxu0 0.0
      %369 = vmatprep.subr.mxu0 0.0
      %370 = vmatpush1.xpose.msra.mxu0 0.0
      %371 = vmatprep.subr.mxu0 0.0
      %372 = vmatpush1.xpose.msra.mxu0 0.0
      %373 = vmatprep.subr.mxu0 0.0
      %374 = vmatpush1.xpose.msra.mxu0 0.0
      %375 = vmatprep.subr.mxu0 0.0
      %376 = vmatpush1.xpose.msra.mxu0 0.0
      %377 = vmatprep.subr.mxu0 0.0
      %378 = vmatpush1.xpose.msra.mxu0 0.0
      %379 = vmatprep.subr.mxu0 0.0
      %380 = vmatpush1.xpose.msra.mxu0 0.0
      %381 = vmatprep.subr.mxu0 0.0
      %382 = vmatpush1.xpose.msra.mxu0 0.0
      %383 = vmatprep.mubr.f32.mxu0 0.0
      %384 = vmatmul.mubr.f32.gmra.mrb[0].mxu0 %v284
      %v385 = vpop.f32.mrb[0].mxu0
      %v386 = vadd.f32 0.0, %v385
      %v387 = vpop.f32.mrb[0].mxu0
      %388 = vmatprep.mubr.f32.mxu0 0.0
      %389 = vmatmul.mubr.f32.gmra.mrb[0].mxu0 %v287
      %v390 = vpop.f32.mrb[0].mxu0
      %v391 = vadd.f32 0.0, %v390
      %v392 = vpop.f32.mrb[0].mxu0
      %393 = vmatprep.mubr.f32.mxu0 0.0
      %394 = vmatmul.mubr.f32.gmra.mrb[0].mxu0 %v290
      %v395 = vpop.f32.mrb[0].mxu0
      %v396 = vadd.f32 0.0, %v395
      %v397 = vpop.f32.mrb[0].mxu0
      %398 = vmatprep.mubr.f32.mxu0 0.0
      %399 = vmatmul.mubr.f32.gmra.mrb[0].mxu0 %v293
      %v400 = vpop.f32.mrb[0].mxu0
      %v401 = vadd.f32 0.0, %v400
      %v402 = vpop.f32.mrb[0].mxu0
      %403 = vmatprep.mubr.f32.mxu0 0.0
      %404 = vmatmul.mubr.f32.gmra.mrb[0].mxu0 %v296
      %v405 = vpop.f32.mrb[0].mxu0
      %v406 = vadd.f32 0.0, %v405
      %v407 = vpop.f32.mrb[0].mxu0
      %408 = vmatprep.mubr.f32.mxu0 0.0
      %409 = vmatmul.mubr.f32.gmra.mrb[0].mxu0 %v299
      %v410 = vpop.f32.mrb[0].mxu0
      %v411 = vadd.f32 0.0, %v410
      %v412 = vpop.f32.mrb[0].mxu0
      %413 = vmatprep.mubr.f32.mxu0 0.0
      %414 = vmatmul.mubr.f32.gmra.mrb[0].mxu0 %v302
      %v415 = vpop.f32.mrb[0].mxu0
      %v416 = vadd.f32 0.0, %v415
      %v417 = vpop.f32.mrb[0].mxu0
      %418 = vmatprep.mubr.f32.mxu0 0.0
      %419 = vmatmul.mubr.f32.gmra.mrb[0].mxu0 %v305
      %v420 = vpop.f32.mrb[0].mxu0
      %v421 = vadd.f32 0.0, %v420
      %v422 = vpop.f32.mrb[0].mxu0
      %423 = vdwg.mxu0
      %vm424 = vcmask 261120
      %v425 = vsel %vm424, %v386, -inf
      %426 = vmax.xlane.f32.xlu0 %v425
      %v427 = vpop.xlane.xlu0 %426
      %v428 = vsel %vm424, %v391, -inf
      %429 = vmax.xlane.f32.xlu0 %v428
      %v430 = vpop.xlane.xlu0 %429
      %v431 = vsel %vm424, %v396, -inf
      %432 = vmax.xlane.f32.xlu0 %v431
      %v433 = vpop.xlane.xlu0 %432
      %v434 = vsel %vm424, %v401, -inf
      %435 = vmax.xlane.f32.xlu0 %v434
      %v436 = vpop.xlane.xlu0 %435
      %v437 = vsel %vm424, %v406, -inf
      %438 = vmax.xlane.f32.xlu0 %v437
      %v439 = vpop.xlane.xlu0 %438
      %v440 = vsel %vm424, %v411, -inf
      %441 = vmax.xlane.f32.xlu0 %v440
      %v442 = vpop.xlane.xlu0 %441
      %v443 = vsel %vm424, %v416, -inf
      %444 = vmax.xlane.f32.xlu0 %v443
      %v445 = vpop.xlane.xlu0 %444
      %v446 = vsel %vm424, %v421, -inf
      %447 = vmax.xlane.f32.xlu0 %v446
      %v448 = vpop.xlane.xlu0 %447
      %v449 = vsub.f32 %v386, %v427
      %v450 = vsub.f32 %v391, %v430
      %v451 = vsub.f32 %v396, %v433
      %v452 = vsub.f32 %v401, %v436
      %v453 = vsub.f32 %v406, %v439
      %v454 = vsub.f32 %v411, %v442
      %v455 = vsub.f32 %v416, %v445
      %v456 = vsub.f32 %v421, %v448
      %v457 = vmul.f32 %v449, 1.442695
      %v458 = vpow.pop %v457
      %v459 = vmul.f32 %v450, 1.442695
      %v460 = vpow.pop %v459
      %v461 = vmul.f32 %v451, 1.442695
      %v462 = vpow.pop %v461
      %v463 = vmul.f32 %v452, 1.442695
      %v464 = vpow.pop %v463
      %v465 = vmul.f32 %v453, 1.442695
      %v466 = vpow.pop %v465
      %v467 = vmul.f32 %v454, 1.442695
      %v468 = vpow.pop %v467
      %v469 = vmul.f32 %v455, 1.442695
      %v470 = vpow.pop %v469
      %v471 = vmul.f32 %v456, 1.442695
      %v472 = vpow.pop %v471
      %v473 = vsel %vm424, %v458, 0.0
      %474 = vadd.xlane.f32.xlu0 %v473
      %v475 = vpop.xlane.xlu0 %474
      %v476 = vsel %vm424, %v460, 0.0
      %477 = vadd.xlane.f32.xlu0 %v476
      %v478 = vpop.xlane.xlu0 %477
      %v479 = vsel %vm424, %v462, 0.0
      %480 = vadd.xlane.f32.xlu0 %v479
      %v481 = vpop.xlane.xlu0 %480
      %v482 = vsel %vm424, %v464, 0.0
      %483 = vadd.xlane.f32.xlu0 %v482
      %v484 = vpop.xlane.xlu0 %483
      %v485 = vsel %vm424, %v466, 0.0
      %486 = vadd.xlane.f32.xlu0 %v485
      %v487 = vpop.xlane.xlu0 %486
      %v488 = vsel %vm424, %v468, 0.0
      %489 = vadd.xlane.f32.xlu0 %v488
      %v490 = vpop.xlane.xlu0 %489
      %v491 = vsel %vm424, %v470, 0.0
      %492 = vadd.xlane.f32.xlu0 %v491
      %v493 = vpop.xlane.xlu0 %492
      %v494 = vsel %vm424, %v472, 0.0
      %495 = vadd.xlane.f32.xlu0 %v494
      %v496 = vpop.xlane.xlu0 %495
      %v497 = vrcp.pop %v475
      %v498 = vmul.f32 1.0, %v497
      %v499 = vrcp.pop %v478
      %v500 = vmul.f32 1.0, %v499
      %v501 = vrcp.pop %v481
      %v502 = vmul.f32 1.0, %v501
      %v503 = vrcp.pop %v484
      %v504 = vmul.f32 1.0, %v503
      %v505 = vrcp.pop %v487
      %v506 = vmul.f32 1.0, %v505
      %v507 = vrcp.pop %v490
      %v508 = vmul.f32 1.0, %v507
      %v509 = vrcp.pop %v493
      %v510 = vmul.f32 1.0, %v509
      %v511 = vrcp.pop %v496
      %v512 = vmul.f32 1.0, %v511
      %v513 = vmul.f32 %v458, %v498
      %v514 = vmul.f32 %v460, %v500
      %v515 = vmul.f32 %v462, %v502
      %v516 = vmul.f32 %v464, %v504
      %v517 = vmul.f32 %v466, %v506
      %v518 = vmul.f32 %v468, %v508
      %v519 = vmul.f32 %v470, %v510
      %v520 = vmul.f32 %v472, %v512
      %v522 = vsel %vm424, %v513, 0
      %v525 = vsel %vm424, %v514, 0
      %v528 = vsel %vm424, %v515, 0
      %v531 = vsel %vm424, %v516, 0
      %v534 = vsel %vm424, %v517, 0
      %v537 = vsel %vm424, %v518, 0
      %v540 = vsel %vm424, %v519, 0
      %v543 = vsel %vm424, %v520, 0
      %545 = vmatprep.subr.mxu0 0.0
      %546 = vmatpush1.msra.mxu0 %v270
      %547 = vmatprep.subr.mxu0 0.0
      %548 = vmatpush1.msra.mxu0 %v271
      %549 = vmatprep.subr.mxu0 0.0
      %550 = vmatpush1.msra.mxu0 %v272
      %551 = vmatprep.subr.mxu0 0.0
      %552 = vmatpush1.msra.mxu0 %v273
      %553 = vmatprep.subr.mxu0 0.0
      %554 = vmatpush1.msra.mxu0 0.0
      %555 = vmatprep.subr.mxu0 0.0
      %556 = vmatpush1.msra.mxu0 0.0
      %557 = vmatprep.subr.mxu0 0.0
      %558 = vmatpush1.msra.mxu0 0.0
      %559 = vmatprep.subr.mxu0 0.0
      %560 = vmatpush1.msra.mxu0 0.0
      %561 = vmatprep.subr.mxu0 0.0
      %562 = vmatpush1.msra.mxu0 0.0
      %563 = vmatprep.subr.mxu0 0.0
      %564 = vmatpush1.msra.mxu0 0.0
      %565 = vmatprep.subr.mxu0 0.0
      %566 = vmatpush1.msra.mxu0 0.0
      %567 = vmatprep.subr.mxu0 0.0
      %568 = vmatpush1.msra.mxu0 0.0
      %569 = vmatprep.subr.mxu0 0.0
      %570 = vmatpush1.msra.mxu0 0.0
      %571 = vmatprep.subr.mxu0 0.0
      %572 = vmatpush1.msra.mxu0 0.0
      %573 = vmatprep.subr.mxu0 0.0
      %574 = vmatpush1.msra.mxu0 0.0
      %575 = vmatprep.subr.mxu0 0.0
      %576 = vmatpush1.msra.mxu0 0.0
      %577 = vmatprep.subr.mxu0 0.0
      %578 = vmatpush1.msra.mxu0 0.0
      %579 = vmatprep.subr.mxu0 0.0
      %580 = vmatpush1.msra.mxu0 0.0
      %581 = vmatprep.subr.mxu0 0.0
      %582 = vmatpush1.msra.mxu0 0.0
      %583 = vmatprep.subr.mxu0 0.0
      %584 = vmatpush1.msra.mxu0 0.0
      %585 = vmatprep.subr.mxu0 0.0
      %586 = vmatpush1.msra.mxu0 0.0
      %587 = vmatprep.subr.mxu0 0.0
      %588 = vmatpush1.msra.mxu0 0.0
      %589 = vmatprep.subr.mxu0 0.0
      %590 = vmatpush1.msra.mxu0 0.0
      %591 = vmatprep.subr.mxu0 0.0
      %592 = vmatpush1.msra.mxu0 0.0
      %593 = vmatprep.subr.mxu0 0.0
      %594 = vmatpush1.msra.mxu0 0.0
      %595 = vmatprep.subr.mxu0 0.0
      %596 = vmatpush1.msra.mxu0 0.0
      %597 = vmatprep.subr.mxu0 0.0
      %598 = vmatpush1.msra.mxu0 0.0
      %599 = vmatprep.subr.mxu0 0.0
      %600 = vmatpush1.msra.mxu0 0.0
      %601 = vmatprep.subr.mxu0 0.0
      %602 = vmatpush1.msra.mxu0 0.0
      %603 = vmatprep.subr.mxu0 0.0
      %604 = vmatpush1.msra.mxu0 0.0
      %605 = vmatprep.subr.mxu0 0.0
      %606 = vmatpush1.msra.mxu0 0.0
      %607 = vmatprep.subr.mxu0 0.0
      %608 = vmatpush1.msra.mxu0 0.0
      %609 = vmatprep.mubr.f32.mxu0 0.0
      %610 = vmatmul.mubr.f32.gmra.mrb[0].mxu0 %v522
      %v611 = vpop.f32.mrb[0].mxu0
      %v612 = vadd.f32 0.0, %v611
      %v613 = vpop.f32.mrb[0].mxu0
      %614 = vmatprep.mubr.f32.mxu0 0.0
      %615 = vmatmul.mubr.f32.gmra.mrb[0].mxu0 %v525
      %v616 = vpop.f32.mrb[0].mxu0
      %v617 = vadd.f32 0.0, %v616
      %v618 = vpop.f32.mrb[0].mxu0
      %619 = vmatprep.mubr.f32.mxu0 0.0
      %620 = vmatmul.mubr.f32.gmra.mrb[0].mxu0 %v528
      %v621 = vpop.f32.mrb[0].mxu0
      %v622 = vadd.f32 0.0, %v621
      %v623 = vpop.f32.mrb[0].mxu0
      %624 = vmatprep.mubr.f32.mxu0 0.0
      %625 = vmatmul.mubr.f32.gmra.mrb[0].mxu0 %v531
      %v626 = vpop.f32.mrb[0].mxu0
      %v627 = vadd.f32 0.0, %v626
      %v628 = vpop.f32.mrb[0].mxu0
      %629 = vmatprep.mubr.f32.mxu0 0.0
      %630 = vmatmul.mubr.f32.gmra.mrb[0].mxu0 %v534
      %v631 = vpop.f32.mrb[0].mxu0
      %v632 = vadd.f32 0.0, %v631
      %v633 = vpop.f32.mrb[0].mxu0
      %634 = vmatprep.mubr.f32.mxu0 0.0
      %635 = vmatmul.mubr.f32.gmra.mrb[0].mxu0 %v537
      %v636 = vpop.f32.mrb[0].mxu0
      %v637 = vadd.f32 0.0, %v636
      %v638 = vpop.f32.mrb[0].mxu0
      %639 = vmatprep.mubr.f32.mxu0 0.0
      %640 = vmatmul.mubr.f32.gmra.mrb[0].mxu0 %v540
      %v641 = vpop.f32.mrb[0].mxu0
      %v642 = vadd.f32 0.0, %v641
      %v643 = vpop.f32.mrb[0].mxu0
      %644 = vmatprep.mubr.f32.mxu0 0.0
      %645 = vmatmul.mubr.f32.gmra.mrb[0].mxu0 %v543
      %v646 = vpop.f32.mrb[0].mxu0
      %v647 = vadd.f32 0.0, %v646
      %v648 = vpop.f32.mrb[0].mxu0
      %649 = vdwg.mxu0
      %650 = vst.msk [vmem:[%s257] sm:$0xff] %vm424, %v612
      %651 = vst.msk [vmem:[%s257 + $0x8] sm:$0xff] %vm424, %v617
      %652 = vst.msk [vmem:[%s257 + $0x10] sm:$0xff] %vm424, %v622
      %653 = vst.msk [vmem:[%s257 + $0x18] sm:$0xff] %vm424, %v627
      %654 = vst.msk [vmem:[%s257 + $0x20] sm:$0xff] %vm424, %v632
      %655 = vst.msk [vmem:[%s257 + $0x28] sm:$0xff] %vm424, %v637
      %656 = vst.msk [vmem:[%s257 + $0x30] sm:$0xff] %vm424, %v642
      %657 = vst.msk [vmem:[%s257 + $0x38] sm:$0xff] %vm424, %v647
      %p658 = scmp.lt.s32.totalorder %s15, 1
      %s659 = scalar_select %p658, %s15, 1
      %s660 = smul.addr %s659, 8
      %s661 = smul.addr %s660, 8
      %s662 = scalar_lea.vmem %s4, %s661
      // Predicated region
      $region37: #{tpu_custom_call.1} parent=35 // pred_check
        %p663 = pneg %p137
      $region38: #{tpu_custom_call.1} parent=35 // pred_check_branch
        %665 = sbr.rel (%p663) target = $region40
      $region39: #{tpu_custom_call.1} parent=35 // pred_region
        _
      $region40: #{tpu_custom_call.1} parent=35 // pred_fallthru
        _
    $region36: #{tpu_custom_call.1} parent=5 // pred_fallthru
      _
    %p666 = scmp.le.s32.totalorder 2, %s10
    // Predicated region
    $region41: #{tpu_custom_call.1} parent=5 // pred_check
      %p667 = pneg %p666
    $region42: #{tpu_custom_call.1} parent=5 // pred_check_branch
      %669 = sbr.rel (%p667) target = $region44
    $region43: #{tpu_custom_call.1} parent=5 // pred_region
      %s670 = ssub.s32 %s10, 2
      // Predicated region
      $region45: #{tpu_custom_call.1} parent=43 // pred_check
        %p671 = pneg %p143
      $region46: #{tpu_custom_call.1} parent=43 // pred_check_branch
        %673 = sbr.rel (%p671) target = $region48
      $region47: #{tpu_custom_call.1} parent=43 // pred_region
        %p674 = scmp.lt.s32.totalorder %s16, 1
        %s675 = scalar_select %p674, %s16, 1
        %s676 = smul.addr %s675, 8
        %s677 = smul.addr %s676, 8
        %s678 = scalar_lea.vmem %s4, %s677
      $region48: #{tpu_custom_call.1} parent=43 // pred_fallthru
        _
    $region44: #{tpu_custom_call.1} parent=5 // pred_fallthru
      _
  $region6: #{tpu_custom_call.1} parent=0 // loop_footer
    %s14 = sadd.s32 1, %s10
  $region7: #{tpu_custom_call.1} parent=0 // loop_footer_branch
    %9 = sbr.rel target = $region3
  $region8: #{tpu_custom_call.1} parent=0 // loop_exit
    _

</llo_original>
